<compile_context>
chip_gen: v7x
topology: tpu7x:2x2x1
jax: 0.10.0
libtpu: 0.0.40
codegen_flags: <defaults>
</compile_context>

<pallas_src>
import functools

import jax
import jax.numpy as jnp
from jax.experimental import pallas as pl
from jax.experimental.pallas import tpu as pltpu


def _sepconv1d_vpu_kernel(x_ref, wdw_ref, wpw_ref, o_ref, *scratch,
                          K, stride, dilation, padding, L, L_out):
    """Exact-f32 VPU path for small channel counts.

    x_ref  : (C_in, L)          one batch element (squeezed)
    wdw_ref: (C_in, K)  f32     depthwise weights
    wpw_ref: (C_out, C_in) f32  pointwise weights
    o_ref  : (C_out, L_out)
    scratch[0] (only if padding > 0): (C_in, L + 2*padding) f32 zero-padded copy of x.
    """
    C_in = x_ref.shape[0]
    C_out = o_ref.shape[0]
    f32 = jnp.float32

    if padding > 0:
        xs_ref = scratch[0]
        W_pad = xs_ref.shape[1]
        # Re-zero the halo every step (cheap) so this is correct even when the parallel batch
        # axis is split across TensorCores (each core has its own scratch instance).
        xs_ref[:, 0:padding] = jnp.zeros((C_in, padding), f32)
        right = W_pad - (padding + L)
        if right > 0:
            xs_ref[:, padding + L:W_pad] = jnp.zeros((C_in, right), f32)
        xs_ref[:, padding:padding + L] = x_ref[...].astype(f32)
        src = xs_ref
    else:
        src = x_ref

    fir_w = L_out if stride == 1 else (L_out - 1) * stride + 1

    # Depthwise K-tap FIR: per-tap loads straight from the ref at static offsets (VPU, f32).
    wdw = wdw_ref[...].astype(f32)                         # (C_in, K), tiny
    y = jnp.zeros((C_in, fir_w), f32)
    for k in range(K):
        off = k * dilation
        xk = src[:, off:off + fir_w].astype(f32)
        y = y + xk * jax.lax.slice(wdw, (0, k), (C_in, k + 1))

    if stride > 1:
        # TODO(synk): replace with strided per-tap ref loads (pl.ds(..., stride=stride)).
        y = jax.lax.slice(y, (0, 0), (C_in, fir_w), (1, stride))

    # Pointwise 1x1 conv as C_in broadcast FMAs — a (C_out x C_in) matmul would use <1% of the
    # MXU at these sizes, and staying on the VPU in f32 keeps exact PyTorch numerics.
    wpw = wpw_ref[...].astype(f32)                         # (C_out, C_in)
    out = jnp.zeros((C_out, L_out), f32)
    for ci in range(C_in):
        out = out + (jax.lax.slice(wpw, (0, ci), (C_out, ci + 1)) *
                     jax.lax.slice(y, (ci, 0), (ci + 1, L_out)))
    o_ref[...] = out.astype(o_ref.dtype)


def _sepconv1d_mxu_kernel(x_ref, m_ref, o_ref, *scratch,
                          K, stride, dilation, padding, L, L_out):
    """MXU path: depthwise FIR folded into the pointwise via combined weights M_k = wpw * wdw[:, k].

    x_ref: (C_in, L), m_ref: (K, C_out, C_in) bf16, o_ref: (C_out, L_out)
    scratch[0] (only if padding > 0): (C_in, L + 2*padding) bf16 zero-padded copy of x.
    """
    C_in = x_ref.shape[0]
    C_out = o_ref.shape[0]
    bf16 = jnp.bfloat16

    if padding > 0:
        xs_ref = scratch[0]
        W_pad = xs_ref.shape[1]
        xs_ref[:, 0:padding] = jnp.zeros((C_in, padding), bf16)
        right = W_pad - (padding + L)
        if right > 0:
            xs_ref[:, padding + L:W_pad] = jnp.zeros((C_in, right), bf16)
        xs_ref[:, padding:padding + L] = x_ref[...].astype(bf16)
        src = xs_ref
    else:
        src = x_ref

    fir_w = L_out if stride == 1 else (L_out - 1) * stride + 1

    # out = sum_k M_k @ x[:, k*dil : k*dil + fir_w]   (bf16 operands, f32 accumulation)
    acc = jnp.zeros((C_out, fir_w), jnp.float32)
    for k in range(K):
        off = k * dilation
        xk = src[:, off:off + fir_w].astype(bf16)
        acc = acc + jnp.dot(m_ref[k], xk, preferred_element_type=jnp.float32)

    if stride > 1:
        # TODO(synk): strided per-tap loads / bf16 downsample instead of a full-rate slice.
        acc = jax.lax.slice(acc, (0, 0), (C_out, fir_w), (1, stride))

    o_ref[...] = acc.astype(o_ref.dtype)


def _vmem_limit_bytes():
    # <= 3/4 of the chip's physical VMEM, capped — leaves headroom on v7x (64 MiB total)
    # while letting v5e/v6e (128 MiB) use bigger double-buffered blocks.
    try:
        cap = pltpu.get_tpu_info().vmem_capacity_bytes
        return int(min(cap * 3 // 4, 96 * 1024 * 1024))
    except Exception:
        return 48 * 1024 * 1024


def separable_conv1d(x, w_dw, w_pw, *, stride=1, padding=0, dilation=1):
    """x: (B, C_in, L), w_dw: (C_in, 1, K), w_pw: (C_out, C_in, 1) -> (B, C_out, L_out)."""
    B, C_in, L = x.shape
    K = w_dw.shape[-1]
    C_out = w_pw.shape[0]
    L_out = (L + 2 * padding - dilation * (K - 1) - 1) // stride + 1
    assert L_out > 0, "output length must be positive"
    W_pad = L + 2 * padding

    # Tiny channel counts: the MXU would run at <1% utilization and bf16 casts only cost
    # accuracy -> exact f32 VPU path. Otherwise fold everything into K small MXU matmuls.
    use_mxu = (C_in * C_out >= 4096) or C_in > 64

    wdw2 = w_dw.reshape(C_in, K).astype(jnp.float32)
    wpw2 = w_pw.reshape(C_out, C_in).astype(jnp.float32)

    if use_mxu:
        # M[k, co, ci] = wpw[co, ci] * wdw[ci, k]  (tiny; computed once in the wrapper)
        m = (wpw2[None, :, :] * jnp.transpose(wdw2)[:, None, :]).astype(jnp.bfloat16)
        kernel = functools.partial(_sepconv1d_mxu_kernel, K=K, stride=stride,
                                   dilation=dilation, padding=padding, L=L, L_out=L_out)
        weight_args = (m,)
        weight_specs = [pl.BlockSpec((K, C_out, C_in), lambda b: (0, 0, 0))]
        scratch_dtype = jnp.bfloat16
    else:
        kernel = functools.partial(_sepconv1d_vpu_kernel, K=K, stride=stride,
                                   dilation=dilation, padding=padding, L=L, L_out=L_out)
        weight_args = (wdw2, wpw2)
        weight_specs = [pl.BlockSpec((C_in, K), lambda b: (0, 0)),
                        pl.BlockSpec((C_out, C_in), lambda b: (0, 0))]
        scratch_dtype = jnp.float32

    scratch_shapes = []
    if padding > 0:
        scratch_shapes.append(pltpu.VMEM((C_in, W_pad), scratch_dtype))

    # Blocks: x[b] -> (C_in, L), out[b] -> (C_out, L_out); last two block dims equal the full
    # array dims, so the (8,128) divisibility rule is always satisfied.
    return pl.pallas_call(
        kernel,
        out_shape=jax.ShapeDtypeStruct((B, C_out, L_out), x.dtype),
        grid_spec=pltpu.PrefetchScalarGridSpec(
            num_scalar_prefetch=0,
            grid=(B,),   # >= 2 parallel steps whenever B >= 2, so both v7x TCs get work
            in_specs=[pl.BlockSpec((pl.Squeezed(), C_in, L), lambda b: (b, 0, 0))]
                     + weight_specs,
            out_specs=pl.BlockSpec((pl.Squeezed(), C_out, L_out), lambda b: (b, 0, 0)),
            scratch_shapes=scratch_shapes,
        ),
        compiler_params=pltpu.CompilerParams(
            dimension_semantics=("parallel",),
            vmem_limit_bytes=_vmem_limit_bytes(),
        ),
    )(x, *weight_args)


def _reference(x, w_dw, w_pw, *, stride, padding, dilation):
    # depthwise (groups = C_in) then pointwise, both in full f32 precision
    C_in = x.shape[1]
    y = jax.lax.conv_general_dilated(
        x, w_dw,
        window_strides=(stride,),
        padding=[(padding, padding)],
        rhs_dilation=(dilation,),
        dimension_numbers=("NCH", "OIH", "NCH"),
        feature_group_count=C_in,
        precision=jax.lax.Precision.HIGHEST,
    )
    return jax.lax.conv_general_dilated(
        y, w_pw,
        window_strides=(1,),
        padding=[(0, 0)],
        dimension_numbers=("NCH", "OIH", "NCH"),
        precision=jax.lax.Precision.HIGHEST,
    )


if __name__ == "__main__":
    key = jax.random.PRNGKey(0)
    k1, k2, k3, k4, k5, k6 = jax.random.split(key, 6)

    # 1) module config: SeparableConv1d(in_channels=8, out_channels=16, kernel_size=3,
    #                                   stride=1, padding=1, dilation=1, bias=False)
    #    -> tiny channels: exercises the exact-f32 VPU path.
    B, C_in, L = 2, 8, 16
    C_out, K, stride, padding, dilation = 16, 3, 1, 1, 1
    x = jax.random.normal(k1, (B, C_in, L), dtype=jnp.float32)
    w_dw = jax.random.normal(k2, (C_in, 1, K), dtype=jnp.float32) * 0.1   # (C_in, 1, K)
    w_pw = jax.random.normal(k3, (C_out, C_in, 1), dtype=jnp.float32) * 0.1   # (C_out, C_in, 1)

    out = jax.block_until_ready(
        separable_conv1d(x, w_dw, w_pw, stride=stride, padding=padding, dilation=dilation))
    ref = _reference(x, w_dw, w_pw, stride=stride, padding=padding, dilation=dilation)
    assert out.shape == ref.shape, (out.shape, ref.shape)
    assert jnp.allclose(out, ref, atol=1e-4, rtol=1e-4), float(jnp.max(jnp.abs(out - ref)))

    # 2) moderate channel count: exercises the MXU (folded-FIR, bf16) path.
    B2, C_in2, L2, C_out2 = 2, 128, 256, 256
    x2 = jax.random.normal(k4, (B2, C_in2, L2), dtype=jnp.float32)
    w_dw2 = jax.random.normal(k5, (C_in2, 1, K), dtype=jnp.float32) * 0.05
    w_pw2 = jax.random.normal(k6, (C_out2, C_in2, 1), dtype=jnp.float32) * 0.05
    out2 = jax.block_until_ready(
        separable_conv1d(x2, w_dw2, w_pw2, stride=1, padding=1, dilation=1))
    ref2 = _reference(x2, w_dw2, w_pw2, stride=1, padding=1, dilation=1)
    assert out2.shape == ref2.shape, (out2.shape, ref2.shape)
    # bf16 matmul operands (f32 accumulation) -> relaxed tolerance on this path only
    assert jnp.allclose(out2, ref2, atol=1e-2, rtol=1e-2), float(jnp.max(jnp.abs(out2 - ref2)))

    print("KERNEL_OK")
</pallas_src>

<mosaic_0001>
module attributes {stable_mosaic.version = 11 : i64} {
  func.func @_sepconv1d_vpu_kernel(%arg0: i32, %arg1: memref<1x8x16xf32, #tpu.memory_space<vmem>>, %arg2: memref<8x3xf32, #tpu.memory_space<vmem>>, %arg3: memref<16x8xf32, #tpu.memory_space<vmem>>, %arg4: memref<1x16x16xf32, #tpu.memory_space<vmem>>, %arg5: memref<8x18xf32, #tpu.memory_space<vmem>>) attributes {dimension_semantics = [#tpu.dimension_semantics<parallel>], iteration_bounds = array<i64: 2>, scalar_prefetch = 0 : i64, scratch_operands = 1 : i64, tpu.core_type = #tpu.core_type<tc>, window_params = [{transform_indices = @transform_0, window_bounds = array<i64: 1, 8, 16>}, {pipeline_mode = #tpu.pipeline_mode<synchronous>, transform_indices = @transform_1, window_bounds = array<i64: 8, 3>}, {pipeline_mode = #tpu.pipeline_mode<synchronous>, transform_indices = @transform_2, window_bounds = array<i64: 16, 8>}, {transform_indices = @transform_3, window_bounds = array<i64: 1, 16, 16>}]} {
    %cst = arith.constant 0.000000e+00 : f32
    %0 = vector.broadcast %cst : f32 to vector<8x1xf32>
    %c0 = arith.constant 0 : index
    %c0_0 = arith.constant 0 : index
    %1 = vector.load %arg5[%c0, %c0_0] : memref<8x18xf32, #tpu.memory_space<vmem>>, vector<8x1xf32>
    tpu.vector_store %arg5[%c0, %c0_0], %0 {strides = array<i32>} : memref<8x18xf32, #tpu.memory_space<vmem>>, vector<8x1xf32>,
    %cst_1 = arith.constant 0.000000e+00 : f32
    %2 = vector.broadcast %cst_1 : f32 to vector<8x1xf32>
    %c0_2 = arith.constant 0 : index
    %c17 = arith.constant 17 : index
    %3 = vector.load %arg5[%c0_2, %c17] : memref<8x18xf32, #tpu.memory_space<vmem>>, vector<8x1xf32>
    tpu.vector_store %arg5[%c0_2, %c17], %2 {strides = array<i32>} : memref<8x18xf32, #tpu.memory_space<vmem>>, vector<8x1xf32>,
    %c0_3 = arith.constant 0 : index
    %c0_4 = arith.constant 0 : index
    %c0_5 = arith.constant 0 : index
    %4 = vector.load %arg1[%c0_3, %c0_4, %c0_5] : memref<1x8x16xf32, #tpu.memory_space<vmem>>, vector<1x8x16xf32>
    %5 = vector.shape_cast %4 : vector<1x8x16xf32> to vector<8x16xf32>
    %c0_6 = arith.constant 0 : index
    %c1 = arith.constant 1 : index
    %6 = vector.load %arg5[%c0_6, %c1] : memref<8x18xf32, #tpu.memory_space<vmem>>, vector<8x16xf32>
    tpu.vector_store %arg5[%c0_6, %c1], %5 {strides = array<i32>} : memref<8x18xf32, #tpu.memory_space<vmem>>, vector<8x16xf32>,
    %c0_7 = arith.constant 0 : index
    %c0_8 = arith.constant 0 : index
    %7 = vector.load %arg2[%c0_7, %c0_8] : memref<8x3xf32, #tpu.memory_space<vmem>>, vector<8x3xf32>
    %cst_9 = arith.constant 0.000000e+00 : f32
    %8 = vector.broadcast %cst_9 : f32 to vector<8x16xf32>
    %c0_10 = arith.constant 0 : index
    %c0_11 = arith.constant 0 : index
    %9 = vector.load %arg5[%c0_10, %c0_11] : memref<8x18xf32, #tpu.memory_space<vmem>>, vector<8x16xf32>
    %10 = vector.extract_strided_slice %7 {offsets = [0, 0], sizes = [8, 1], strides = [1, 1]} : vector<8x3xf32> to vector<8x1xf32>
    %11 = vector.broadcast %10 : vector<8x1xf32> to vector<8x16xf32>
    %12 = arith.mulf %9, %11 : vector<8x16xf32>
    %13 = arith.addf %8, %12 : vector<8x16xf32>
    %c0_12 = arith.constant 0 : index
    %c1_13 = arith.constant 1 : index
    %14 = vector.load %arg5[%c0_12, %c1_13] : memref<8x18xf32, #tpu.memory_space<vmem>>, vector<8x16xf32>
    %15 = vector.extract_strided_slice %7 {offsets = [0, 1], sizes = [8, 1], strides = [1, 1]} : vector<8x3xf32> to vector<8x1xf32>
    %16 = vector.broadcast %15 : vector<8x1xf32> to vector<8x16xf32>
    %17 = arith.mulf %14, %16 : vector<8x16xf32>
    %18 = arith.addf %13, %17 : vector<8x16xf32>
    %c0_14 = arith.constant 0 : index
    %c2 = arith.constant 2 : index
    %19 = vector.load %arg5[%c0_14, %c2] : memref<8x18xf32, #tpu.memory_space<vmem>>, vector<8x16xf32>
    %20 = vector.extract_strided_slice %7 {offsets = [0, 2], sizes = [8, 1], strides = [1, 1]} : vector<8x3xf32> to vector<8x1xf32>
    %21 = vector.broadcast %20 : vector<8x1xf32> to vector<8x16xf32>
    %22 = arith.mulf %19, %21 : vector<8x16xf32>
    %23 = arith.addf %18, %22 : vector<8x16xf32>
    %c0_15 = arith.constant 0 : index
    %c0_16 = arith.constant 0 : index
    %24 = vector.load %arg3[%c0_15, %c0_16] : memref<16x8xf32, #tpu.memory_space<vmem>>, vector<16x8xf32>
    %cst_17 = arith.constant 0.000000e+00 : f32
    %25 = vector.broadcast %cst_17 : f32 to vector<16x16xf32>
    %26 = vector.extract_strided_slice %24 {offsets = [0, 0], sizes = [16, 1], strides = [1, 1]} : vector<16x8xf32> to vector<16x1xf32>
    %27 = vector.extract_strided_slice %23 {offsets = [0, 0], sizes = [1, 16], strides = [1, 1]} : vector<8x16xf32> to vector<1x16xf32>
    %28 = vector.broadcast %26 : vector<16x1xf32> to vector<16x16xf32>
    %29 = vector.broadcast %27 : vector<1x16xf32> to vector<16x16xf32>
    %30 = arith.mulf %28, %29 : vector<16x16xf32>
    %31 = arith.addf %25, %30 : vector<16x16xf32>
    %32 = vector.extract_strided_slice %24 {offsets = [0, 1], sizes = [16, 1], strides = [1, 1]} : vector<16x8xf32> to vector<16x1xf32>
    %33 = vector.extract_strided_slice %23 {offsets = [1, 0], sizes = [1, 16], strides = [1, 1]} : vector<8x16xf32> to vector<1x16xf32>
    %34 = vector.broadcast %32 : vector<16x1xf32> to vector<16x16xf32>
    %35 = vector.broadcast %33 : vector<1x16xf32> to vector<16x16xf32>
    %36 = arith.mulf %34, %35 : vector<16x16xf32>
    %37 = arith.addf %31, %36 : vector<16x16xf32>
    %38 = vector.extract_strided_slice %24 {offsets = [0, 2], sizes = [16, 1], strides = [1, 1]} : vector<16x8xf32> to vector<16x1xf32>
    %39 = vector.extract_strided_slice %23 {offsets = [2, 0], sizes = [1, 16], strides = [1, 1]} : vector<8x16xf32> to vector<1x16xf32>
    %40 = vector.broadcast %38 : vector<16x1xf32> to vector<16x16xf32>
    %41 = vector.broadcast %39 : vector<1x16xf32> to vector<16x16xf32>
    %42 = arith.mulf %40, %41 : vector<16x16xf32>
    %43 = arith.addf %37, %42 : vector<16x16xf32>
    %44 = vector.extract_strided_slice %24 {offsets = [0, 3], sizes = [16, 1], strides = [1, 1]} : vector<16x8xf32> to vector<16x1xf32>
    %45 = vector.extract_strided_slice %23 {offsets = [3, 0], sizes = [1, 16], strides = [1, 1]} : vector<8x16xf32> to vector<1x16xf32>
    %46 = vector.broadcast %44 : vector<16x1xf32> to vector<16x16xf32>
    %47 = vector.broadcast %45 : vector<1x16xf32> to vector<16x16xf32>
    %48 = arith.mulf %46, %47 : vector<16x16xf32>
    %49 = arith.addf %43, %48 : vector<16x16xf32>
    %50 = vector.extract_strided_slice %24 {offsets = [0, 4], sizes = [16, 1], strides = [1, 1]} : vector<16x8xf32> to vector<16x1xf32>
    %51 = vector.extract_strided_slice %23 {offsets = [4, 0], sizes = [1, 16], strides = [1, 1]} : vector<8x16xf32> to vector<1x16xf32>
    %52 = vector.broadcast %50 : vector<16x1xf32> to vector<16x16xf32>
    %53 = vector.broadcast %51 : vector<1x16xf32> to vector<16x16xf32>
    %54 = arith.mulf %52, %53 : vector<16x16xf32>
    %55 = arith.addf %49, %54 : vector<16x16xf32>
    %56 = vector.extract_strided_slice %24 {offsets = [0, 5], sizes = [16, 1], strides = [1, 1]} : vector<16x8xf32> to vector<16x1xf32>
    %57 = vector.extract_strided_slice %23 {offsets = [5, 0], sizes = [1, 16], strides = [1, 1]} : vector<8x16xf32> to vector<1x16xf32>
    %58 = vector.broadcast %56 : vector<16x1xf32> to vector<16x16xf32>
    %59 = vector.broadcast %57 : vector<1x16xf32> to vector<16x16xf32>
    %60 = arith.mulf %58, %59 : vector<16x16xf32>
    %61 = arith.addf %55, %60 : vector<16x16xf32>
    %62 = vector.extract_strided_slice %24 {offsets = [0, 6], sizes = [16, 1], strides = [1, 1]} : vector<16x8xf32> to vector<16x1xf32>
    %63 = vector.extract_strided_slice %23 {offsets = [6, 0], sizes = [1, 16], strides = [1, 1]} : vector<8x16xf32> to vector<1x16xf32>
    %64 = vector.broadcast %62 : vector<16x1xf32> to vector<16x16xf32>
    %65 = vector.broadcast %63 : vector<1x16xf32> to vector<16x16xf32>
    %66 = arith.mulf %64, %65 : vector<16x16xf32>
    %67 = arith.addf %61, %66 : vector<16x16xf32>
    %68 = vector.extract_strided_slice %24 {offsets = [0, 7], sizes = [16, 1], strides = [1, 1]} : vector<16x8xf32> to vector<16x1xf32>
    %69 = vector.extract_strided_slice %23 {offsets = [7, 0], sizes = [1, 16], strides = [1, 1]} : vector<8x16xf32> to vector<1x16xf32>
    %70 = vector.broadcast %68 : vector<16x1xf32> to vector<16x16xf32>
    %71 = vector.broadcast %69 : vector<1x16xf32> to vector<16x16xf32>
    %72 = arith.mulf %70, %71 : vector<16x16xf32>
    %73 = arith.addf %67, %72 : vector<16x16xf32>
    %c0_18 = arith.constant 0 : index
    %c0_19 = arith.constant 0 : index
    %c0_20 = arith.constant 0 : index
    %74 = vector.load %arg4[%c0_18, %c0_19, %c0_20] : memref<1x16x16xf32, #tpu.memory_space<vmem>>, vector<1x16x16xf32>
    %75 = vector.shape_cast %74 : vector<1x16x16xf32> to vector<16x16xf32>
    %76 = vector.shape_cast %73 : vector<16x16xf32> to vector<1x16x16xf32>
    tpu.vector_store %arg4[%c0_18, %c0_19, %c0_20], %76 {strides = array<i32>} : memref<1x16x16xf32, #tpu.memory_space<vmem>>, vector<1x16x16xf32>,
    return
  }
  func.func @transform_0(%arg0: i32) -> (i32, i32, i32) {
    %c0_i32 = arith.constant 0 : i32
    %c0_i32_0 = arith.constant 0 : i32
    %c0_i32_1 = arith.constant 0 : i32
    return %arg0, %c0_i32, %c0_i32_0 : i32, i32, i32
  }
  func.func @transform_1(%arg0: i32) -> (i32, i32) {
    %c0_i32 = arith.constant 0 : i32
    %c0_i32_0 = arith.constant 0 : i32
    %c0_i32_1 = arith.constant 0 : i32
    return %c0_i32, %c0_i32_0 : i32, i32
  }
  func.func @transform_2(%arg0: i32) -> (i32, i32) {
    %c0_i32 = arith.constant 0 : i32
    %c0_i32_0 = arith.constant 0 : i32
    %c0_i32_1 = arith.constant 0 : i32
    return %c0_i32, %c0_i32_0 : i32, i32
  }
  func.func @transform_3(%arg0: i32) -> (i32, i32, i32) {
    %c0_i32 = arith.constant 0 : i32
    %c0_i32_0 = arith.constant 0 : i32
    %c0_i32_1 = arith.constant 0 : i32
    return %arg0, %c0_i32, %c0_i32_0 : i32, i32, i32
  }
}

</mosaic_0001>

<llo_original>
// kernel: tpu_custom_call.1
$region0: #{tpu_custom_call.1}
  #allocation0 [shape = 'u32[]', space=smem, size = 0x4, offset = 0x4, fixed_abs, tag = 'smem constant byte address 0x4 - core index']
  #allocation1 [shape = 'u32[144,128]{1,0:T(1,128)}', space=vmem, size = 0x12000, scoped, tag = 'internal scratch']
  #allocation2 [shape = 'f32[8,18]{1,0:T(8,128)}', space=vmem, size = 0x1000, scoped, tag = 'scratch operand']
  %s0 = inlined_call_operand.vmem [shape: f32[2,8,16], index: 0, kind: input, shape index: {}]
  %s1 = inlined_call_operand.vmem [shape: f32[8,3], index: 1, kind: input, shape index: {}]
  %s2 = inlined_call_operand.vmem [shape: f32[16,8], index: 2, kind: input, shape index: {}]
  %s3 = inlined_call_operand.hbm [shape: f32[2,16,16], index: 3, kind: output, shape index: {}]
  %s4 = sld [smem:[#allocation0]]
  $region45: #{tpu_custom_call.1} parent=0
    _
  %s6 = ssub.s32 1, %s4
  %s7 = scalar_select 0, %s6, %s4
  $region1: #{tpu_custom_call.1} parent=0
    #allocation3 [shape = 'u8[16384]{0}', space=vmem, size = 0x4000, scoped, tag = 'output window, operand 0']
    #allocation4 [shape = 's32[2]{0}', space=sflag, size = 0x8, scoped, tag = 'scoped memory for tpu_custom_call.1']
    %8 = vsyncpa [#allocation4], 0
    %s9 = scalar_lea.sflag [#allocation4], 1
    %10 = vsyncpa %s9, 0
    loop: start=0, step=1, limit=4
    $region2: #{tpu_custom_call.1} parent=1 // loop_pre_header
      _
    $region3: #{tpu_custom_call.1} parent=1 // loop_header
      %s12 = sphi 0, %s16
      %p13 = scmp.ge.s32.totalorder %s12, 4
      %s22 = sphi 0, %s24
      %s25 = sphi 0, %s22
      %s26 = sphi 0, %s25
      %s42 = sphi 0, %s26
      %s46 = sphi 0, %s46
      %s48 = sphi 0, %s46
      %s49 = sphi 0, %s48
      %s63 = sphi 0, %s49
      %s67 = sphi 0, %s67
      %s69 = sphi 0, %s67
      %s70 = sphi 0, %s69
      %s84 = sphi 0, %s70
      %s90 = sphi 0, %s92
      %s93 = sphi 0, %s90
      %s94 = sphi 0, %s93
      %s110 = sphi 0, %s94
    $region4: #{tpu_custom_call.1} parent=1 // loop_header_branch
      %15 = sbr.rel (%p13) target = $region8
    $region5: #{tpu_custom_call.1} parent=1 // loop_body
      %s17 = ssub.s32 %s12, 1
      %s18 = ssub.s32 %s12, 2
      %s19 = sadd.s32 %s12, 1
      %s20 = ssub.s32 %s12, %s19
      %p21 = scmp.eq.s32.totalorder %s20, 0
      %s23 = sadd.s32 %s22, 1
      %s24 = scalar_select %p21, %s22, %s23
      %p27 = pneg %p21
      %p28 = scmp.eq.s32.totalorder %s12, 1
      %p29 = por %p27, %p28
      %p30 = scmp.ne.s32.totalorder %s22, %s25
      %p31 = scmp.eq.s32.totalorder %s12, 0
      %p32 = por %p30, %p31
      %p33 = scmp.ne.s32.totalorder %s22, %s25
      %p34 = scmp.eq.s32.totalorder %s17, 1
      %p35 = por %p33, %p34
      %p36 = scmp.ne.s32.totalorder %s25, %s26
      %p37 = scmp.eq.s32.totalorder %s17, 0
      %p38 = por %p36, %p37
      %p39 = scmp.ne.s32.totalorder %s25, %s26
      %p40 = scmp.eq.s32.totalorder %s18, 1
      %p41 = por %p39, %p40
      %p43 = scmp.ne.s32.totalorder %s26, %s42
      %p44 = scmp.eq.s32.totalorder %s18, 0
      %p45 = por %p43, %p44
      %s47 = sadd.s32 %s46, 1
      %p50 = scmp.eq.s32.totalorder %s12, 1
      %p51 = scmp.ne.s32.totalorder %s46, %s48
      %p52 = scmp.eq.s32.totalorder %s12, 0
      %p53 = por %p51, %p52
      %p54 = scmp.ne.s32.totalorder %s46, %s48
      %p55 = scmp.eq.s32.totalorder %s17, 1
      %p56 = por %p54, %p55
      %p57 = scmp.ne.s32.totalorder %s48, %s49
      %p58 = scmp.eq.s32.totalorder %s17, 0
      %p59 = por %p57, %p58
      %p60 = scmp.ne.s32.totalorder %s48, %s49
      %p61 = scmp.eq.s32.totalorder %s18, 1
      %p62 = por %p60, %p61
      %p64 = scmp.ne.s32.totalorder %s49, %s63
      %p65 = scmp.eq.s32.totalorder %s18, 0
      %p66 = por %p64, %p65
      %s68 = sadd.s32 %s67, 1
      %p71 = scmp.eq.s32.totalorder %s12, 1
      %p72 = scmp.ne.s32.totalorder %s67, %s69
      %p73 = scmp.eq.s32.totalorder %s12, 0
      %p74 = por %p72, %p73
      %p75 = scmp.ne.s32.totalorder %s67, %s69
      %p76 = scmp.eq.s32.totalorder %s17, 1
      %p77 = por %p75, %p76
      %p78 = scmp.ne.s32.totalorder %s69, %s70
      %p79 = scmp.eq.s32.totalorder %s17, 0
      %p80 = por %p78, %p79
      %p81 = scmp.ne.s32.totalorder %s69, %s70
      %p82 = scmp.eq.s32.totalorder %s18, 1
      %p83 = por %p81, %p82
      %p85 = scmp.ne.s32.totalorder %s70, %s84
      %p86 = scmp.eq.s32.totalorder %s18, 0
      %p87 = por %p85, %p86
      %s88 = ssub.s32 %s12, %s19
      %p89 = scmp.eq.s32.totalorder %s88, 0
      %s91 = sadd.s32 %s90, 1
      %s92 = scalar_select %p89, %s90, %s91
      %p95 = pneg %p89
      %p96 = scmp.eq.s32.totalorder %s12, 1
      %p97 = por %p95, %p96
      %p98 = scmp.ne.s32.totalorder %s90, %s93
      %p99 = scmp.eq.s32.totalorder %s12, 0
      %p100 = por %p98, %p99
      %p101 = scmp.ne.s32.totalorder %s90, %s93
      %p102 = scmp.eq.s32.totalorder %s17, 1
      %p103 = por %p101, %p102
      %p104 = scmp.ne.s32.totalorder %s93, %s94
      %p105 = scmp.eq.s32.totalorder %s17, 0
      %p106 = por %p104, %p105
      %p107 = scmp.ne.s32.totalorder %s93, %s94
      %p108 = scmp.eq.s32.totalorder %s18, 1
      %p109 = por %p107, %p108
      %p111 = scmp.ne.s32.totalorder %s94, %s110
      %p112 = scmp.eq.s32.totalorder %s18, 0
      %p113 = por %p111, %p112
      %p114 = scmp.le.s32.totalorder 1, %s12
      %p115 = scmp.lt.s32.totalorder %s12, 3
      %p116 = pnand %p114, %p115
      %p117 = pneg %p116
      // Predicated region
      $region9: #{tpu_custom_call.1} parent=5 // pred_check
        _
      $region10: #{tpu_custom_call.1} parent=5 // pred_check_branch
        %119 = sbr.rel (%p116) target = $region12
      $region11: #{tpu_custom_call.1} parent=5 // pred_region
        %s120 = ssub.s32 %s12, 1
        // Predicated region
        $region13: #{tpu_custom_call.1} parent=11 // pred_check
          %p121 = pneg %p59
        $region14: #{tpu_custom_call.1} parent=11 // pred_check_branch
          %123 = sbr.rel (%p121) target = $region16
        $region15: #{tpu_custom_call.1} parent=11 // pred_region
          _
        $region16: #{tpu_custom_call.1} parent=11 // pred_fallthru
          _
        // Predicated region
        $region17: #{tpu_custom_call.1} parent=11 // pred_check
          %p124 = pneg %p80
        $region18: #{tpu_custom_call.1} parent=11 // pred_check_branch
          %126 = sbr.rel (%p124) target = $region20
        $region19: #{tpu_custom_call.1} parent=11 // pred_region
          _
        $region20: #{tpu_custom_call.1} parent=11 // pred_fallthru
          _
      $region12: #{tpu_custom_call.1} parent=5 // pred_fallthru
        _
      %p127 = scmp.lt.s32.totalorder %s12, 2
      // Predicated region
      $region21: #{tpu_custom_call.1} parent=5 // pred_check
        %p128 = pneg %p127
      $region22: #{tpu_custom_call.1} parent=5 // pred_check_branch
        %130 = sbr.rel (%p128) target = $region24
      $region23: #{tpu_custom_call.1} parent=5 // pred_region
        // Predicated region
        $region25: #{tpu_custom_call.1} parent=23 // pred_check
          %p131 = pneg %p32
        $region26: #{tpu_custom_call.1} parent=23 // pred_check_branch
          %133 = sbr.rel (%p131) target = $region28
        $region27: #{tpu_custom_call.1} parent=23 // pred_region
          %p134 = scmp.lt.s32.totalorder %s12, 1
          %s135 = scalar_select %p134, %s12, 1
          %s136 = smul.addr %s135, 8
          %s137 = scalar_lea.vmem %s0, %s136
        $region28: #{tpu_custom_call.1} parent=23 // pred_fallthru
          _
      $region24: #{tpu_custom_call.1} parent=5 // pred_fallthru
        _
      %p138 = scmp.le.s32.totalorder 1, %s12
      %p139 = scmp.lt.s32.totalorder %s12, 3
      %p140 = pnand %p138, %p139
      %p141 = pneg %p140
      // Predicated region
      $region29: #{tpu_custom_call.1} parent=5 // pred_check
        _
      $region30: #{tpu_custom_call.1} parent=5 // pred_check_branch
        %143 = sbr.rel (%p140) target = $region32
      $region31: #{tpu_custom_call.1} parent=5 // pred_region
        %s144 = ssub.s32 %s12, 1
        %p145 = scmp.lt.s32.totalorder %s17, 1
        %s146 = scalar_select %p145, %s17, 1
        %s147 = smul.addr %s146, 8
        %s148 = scalar_lea.vmem %s0, %s147
        %p149 = pneg %p38
        %p150 = pneg %p35
        %p151 = pneg %p59
        %p152 = pneg %p56
        %p153 = pneg %p80
        %p154 = pneg %p77
        %p155 = pneg %p106
        %p156 = pneg %p103
        %s157 = sand.u32 %s93, 1
        %s158 = scalar_lea.sflag [#allocation4], %s157
        %s159 = sand.u32 %s93, 1
        %s160 = smul.addr %s159, 16
        %s161 = scalar_lea.vmem [#allocation3], %s160
        %p162 = scmp.lt.s32.totalorder %s17, 1
        %s163 = scalar_select %p162, %s17, 1
        %s164 = smul.addr %s163, 8
        %s165 = scalar_lea.vmem %s0, %s164
        %vm166 = vcmask 7168
        %167 = vst.msk [vmem:[#allocation2] sm:$0xff] %vm166, 0.0
        %vm168 = vcmask 146568
        %169 = vst.msk [vmem:[#allocation2] sm:$0xff] %vm168, 0.0
        %v170 = vld [vmem:[%s165] sm:$0xff]
        %172 = vrot.lane.b32.xlu0 %v170, 1
        %v173 = vpop.permute.xlu0 %172
        %vm175 = vcmask 138248
        %176 = vst.msk [vmem:[#allocation2] sm:$0xff] %vm175, %v173
        %v177 = vld [vmem:[%s1] sm:$0xff]
        %v178 = vld [vmem:[#allocation2] sm:$0xff]
        %180 = vset.pattern.permute.xlu0 0
        %181 = vperm.xlu0 %180, %v177
        %v182 = vpop.permute.xlu0 %181
        %v184 = vmul.f32 %v178, %v182
        %v185 = vadd.f32 %v184, 0.0
        %186 = vset.pattern.permute.xlu0 1
        %187 = vperm.xlu0 %186, %v177
        %v188 = vpop.permute.xlu0 %187
        %v190 = vmul.f32 %v178, %v188
        %192 = vrot.lane.b32.xlu0 %v190, 127
        %v193 = vpop.permute.xlu0 %192
        %v195 = vadd.f32 %v185, %v193
        %196 = vset.pattern.permute.xlu0 2
        %197 = vperm.xlu0 %196, %v177
        %v198 = vpop.permute.xlu0 %197
        %v200 = vmul.f32 %v178, %v198
        %202 = vrot.lane.b32.xlu0 %v200, 126
        %v203 = vpop.permute.xlu0 %202
        %v205 = vadd.f32 %v195, %v203
        %v206 = vld [vmem:[%s2] sm:$0xff]
        %v207 = vld [vmem:[%s2 + $0x8] sm:$0xff]
        %209 = vset.pattern.permute.xlu0 0
        %210 = vperm.xlu0 %209, %v206
        %v211 = vpop.permute.xlu0 %210
        %214 = vset.pattern.permute.xlu0 0
        %215 = vperm.xlu0 %214, %v207
        %v216 = vpop.permute.xlu0 %215
        %v218 = vlaneseq
        %v219 = vshrl.u32 %v218, 7
        %v220 = vsub.s32 0, %v219
        %v221 = vrot.slane %v205, %v220
        %v222 = vmul.f32 %v211, %v221
        %v223 = vmul.f32 %v216, %v221
        %v224 = vadd.f32 %v222, 0.0
        %v225 = vadd.f32 %v223, 0.0
        %226 = vset.pattern.permute.xlu0 1
        %227 = vperm.xlu0 %226, %v206
        %v228 = vpop.permute.xlu0 %227
        %230 = vset.pattern.permute.xlu0 1
        %231 = vperm.xlu0 %230, %v207
        %v232 = vpop.permute.xlu0 %231
        %v234 = vlaneseq
        %v235 = vshrl.u32 %v234, 7
        %v236 = vsub.s32 1, %v235
        %v237 = vrot.slane %v205, %v236
        %v238 = vmul.f32 %v228, %v237
        %v239 = vmul.f32 %v232, %v237
        %v240 = vadd.f32 %v224, %v238
        %v241 = vadd.f32 %v225, %v239
        %242 = vset.pattern.permute.xlu0 2
        %243 = vperm.xlu0 %242, %v206
        %v244 = vpop.permute.xlu0 %243
        %246 = vset.pattern.permute.xlu0 2
        %247 = vperm.xlu0 %246, %v207
        %v248 = vpop.permute.xlu0 %247
        %v250 = vlaneseq
        %v251 = vshrl.u32 %v250, 7
        %v252 = vsub.s32 2, %v251
        %v253 = vrot.slane %v205, %v252
        %v254 = vmul.f32 %v244, %v253
        %v255 = vmul.f32 %v248, %v253
        %v256 = vadd.f32 %v240, %v254
        %v257 = vadd.f32 %v241, %v255
        %258 = vset.pattern.permute.xlu0 3
        %259 = vperm.xlu0 %258, %v206
        %v260 = vpop.permute.xlu0 %259
        %262 = vset.pattern.permute.xlu0 3
        %263 = vperm.xlu0 %262, %v207
        %v264 = vpop.permute.xlu0 %263
        %v266 = vlaneseq
        %v267 = vshrl.u32 %v266, 7
        %v268 = vsub.s32 3, %v267
        %v269 = vrot.slane %v205, %v268
        %v270 = vmul.f32 %v260, %v269
        %v271 = vmul.f32 %v264, %v269
        %v272 = vadd.f32 %v256, %v270
        %v273 = vadd.f32 %v257, %v271
        %274 = vset.pattern.permute.xlu0 4
        %275 = vperm.xlu0 %274, %v206
        %v276 = vpop.permute.xlu0 %275
        %278 = vset.pattern.permute.xlu0 4
        %279 = vperm.xlu0 %278, %v207
        %v280 = vpop.permute.xlu0 %279
        %v282 = vlaneseq
        %v283 = vshrl.u32 %v282, 7
        %v284 = vsub.s32 4, %v283
        %v285 = vrot.slane %v205, %v284
        %v286 = vmul.f32 %v276, %v285
        %v287 = vmul.f32 %v280, %v285
        %v288 = vadd.f32 %v272, %v286
        %v289 = vadd.f32 %v273, %v287
        %290 = vset.pattern.permute.xlu0 5
        %291 = vperm.xlu0 %290, %v206
        %v292 = vpop.permute.xlu0 %291
        %294 = vset.pattern.permute.xlu0 5
        %295 = vperm.xlu0 %294, %v207
        %v296 = vpop.permute.xlu0 %295
        %v298 = vlaneseq
        %v299 = vshrl.u32 %v298, 7
        %v300 = vsub.s32 5, %v299
        %v301 = vrot.slane %v205, %v300
        %v302 = vmul.f32 %v292, %v301
        %v303 = vmul.f32 %v296, %v301
        %v304 = vadd.f32 %v288, %v302
        %v305 = vadd.f32 %v289, %v303
        %306 = vset.pattern.permute.xlu0 6
        %307 = vperm.xlu0 %306, %v206
        %v308 = vpop.permute.xlu0 %307
        %310 = vset.pattern.permute.xlu0 6
        %311 = vperm.xlu0 %310, %v207
        %v312 = vpop.permute.xlu0 %311
        %v314 = vlaneseq
        %v315 = vshrl.u32 %v314, 7
        %v316 = vsub.s32 6, %v315
        %v317 = vrot.slane %v205, %v316
        %v318 = vmul.f32 %v308, %v317
        %v319 = vmul.f32 %v312, %v317
        %v320 = vadd.f32 %v304, %v318
        %v321 = vadd.f32 %v305, %v319
        %322 = vset.pattern.permute.xlu0 7
        %323 = vperm.xlu0 %322, %v206
        %v324 = vpop.permute.xlu0 %323
        %326 = vset.pattern.permute.xlu0 7
        %327 = vperm.xlu0 %326, %v207
        %v328 = vpop.permute.xlu0 %327
        %v330 = vlaneseq
        %v331 = vshrl.u32 %v330, 7
        %v332 = vsub.s32 7, %v331
        %v333 = vrot.slane %v205, %v332
        %v334 = vmul.f32 %v324, %v333
        %v335 = vmul.f32 %v328, %v333
        %v336 = vadd.f32 %v320, %v334
        %v337 = vadd.f32 %v321, %v335
        %vm338 = vcmask 130048
        %339 = vst.msk [vmem:[%s161] sm:$0xff] %vm338, %v336
        %340 = vst.msk [vmem:[%s161 + $0x8] sm:$0xff] %vm338, %v337
        %s341 = sand.u32 %s93, 1
        %s342 = scalar_lea.sflag [#allocation4], %s341
        %s343 = sand.u32 %s93, 1
        %s344 = smul.addr %s343, 16
        %s345 = scalar_lea.vmem [#allocation3], %s344
        // Predicated region
        $region33: #{tpu_custom_call.1} parent=31 // pred_check
          %p346 = pneg %p103
        $region34: #{tpu_custom_call.1} parent=31 // pred_check_branch
          %348 = sbr.rel (%p346) target = $region36
        $region35: #{tpu_custom_call.1} parent=31 // pred_region
          %s350 = ssub.s32 256, 256
          %351 = vsyncadd %s342, %s350
          %s352 = smul.addr %s17, 2
          %s353 = smul.addr %s352, 128
          %s354 = scalar_lea.hbm %s3, %s353
          %s355 = sshll.u32 %s345, 4
          %s356 = int_to_ptr.vmem [resolvable:$true] %s355
          %361 = dma.vmem_to_hbm [thread:$0]  %s356, 256, %s354, %s342, 128, 128, 8
        $region36: #{tpu_custom_call.1} parent=31 // pred_fallthru
          _
      $region32: #{tpu_custom_call.1} parent=5 // pred_fallthru
        _
      %p362 = scmp.le.s32.totalorder 2, %s12
      // Predicated region
      $region37: #{tpu_custom_call.1} parent=5 // pred_check
        %p363 = pneg %p362
      $region38: #{tpu_custom_call.1} parent=5 // pred_check_branch
        %365 = sbr.rel (%p363) target = $region40
      $region39: #{tpu_custom_call.1} parent=5 // pred_region
        %s366 = ssub.s32 %s12, 2
        // Predicated region
        $region41: #{tpu_custom_call.1} parent=39 // pred_check
          %p367 = pneg %p109
        $region42: #{tpu_custom_call.1} parent=39 // pred_check_branch
          %369 = sbr.rel (%p367) target = $region44
        $region43: #{tpu_custom_call.1} parent=39 // pred_region
          %s370 = sand.u32 %s94, 1
          %s371 = scalar_lea.sflag [#allocation4], %s370
          %s372 = sand.u32 %s94, 1
          %s373 = smul.addr %s372, 16
          %s374 = scalar_lea.vmem [#allocation3], %s373
          %375 = dma.done %s371, 256
        $region44: #{tpu_custom_call.1} parent=39 // pred_fallthru
          _
      $region40: #{tpu_custom_call.1} parent=5 // pred_fallthru
        _
    $region6: #{tpu_custom_call.1} parent=1 // loop_footer
      %s16 = sadd.s32 1, %s12
    $region7: #{tpu_custom_call.1} parent=1 // loop_footer_branch
      %11 = sbr.rel target = $region3
    $region8: #{tpu_custom_call.1} parent=1 // loop_exit
      _
    %376 = vsyncpa [#allocation4], 1
    %s377 = scalar_lea.sflag [#allocation4], 1
    %378 = vsyncpa %s377, 1

</llo_original>
